<compile_context>
chip_gen: v7x
topology: tpu7x:2x2x1
jax: 0.10.0
libtpu: 0.0.40
codegen_flags: <defaults>
</compile_context>

<pallas_src>
import jax
import jax.numpy as jnp
from jax.experimental import pallas as pl
from jax.experimental.pallas import tpu as pltpu

EPS = 1e-10
_LANE = 128

_TARGET_BLOCK_BYTES = 2 * 1024 * 1024   # aim for ~2 MiB per x block
_MAX_BLOCK_BYTES = 6 * 1024 * 1024      # 4x (in+out, double-buffered) <= 24 MiB
_MIN_BLOCK_BYTES = 1 * 1024 * 1024      # don't shrink DMAs below ~1 MiB
_MIN_TOTAL_STEPS = 8                    # >= 4 grid steps per v7x TensorCore
_VMEM_LIMIT_BYTES = 32 * 1024 * 1024    # explicit (v5e scoped default is 16 MiB)


def _sublane_pack(itemsize: int) -> int:
    # 8 for f32, 16 for bf16, 32 for int8.
    return max(32 // max(itemsize, 1), 8)


def _l2norm_kernel(x_ref, w_ref, o_ref):
    # Rank-agnostic body: channel dim is always axis 1 of the block.
    x = x_ref[...].astype(jnp.float32)
    sq_sum = jnp.sum(x * x, axis=1, keepdims=True)
    # eps added AFTER sqrt (matches torch); exact reciprocal keeps 1e-5 rtol
    # even with SSD's gamma=20 scale; it is not on the critical path anyway.
    inv = pl.reciprocal(jnp.sqrt(sq_sum) + EPS, approx=False)
    o_ref[...] = (x * inv * w_ref[...].astype(jnp.float32)).astype(o_ref.dtype)


def _choose_tile_units(total_units: int, unit_bytes: int, n_outer: int,
                       quantum: int) -> int:
    """Tile size along the spatial grid axis (1 unit = one 128-lane column).

    `unit_bytes` is the per-unit x-block cost including layout padding.  The
    pipelined footprint is ~4x one block (in + out, double-buffered), so a
    6 MiB block cap keeps the aggregate under ~24 MiB on every generation.
    """
    cap_vmem = max(_MAX_BLOCK_BYTES // unit_bytes, 1)
    target = max(_TARGET_BLOCK_BYTES // unit_bytes, 1)
    min_dma = max(_MIN_BLOCK_BYTES // unit_bytes, 1)

    tile = min(total_units, cap_vmem, target)

    # Prefer >= _MIN_TOTAL_STEPS total grid steps so pipeline fill/drain is
    # hidden and both v7x cores stay fed, but never shrink a block below
    # ~1 MiB just to manufacture steps.
    steps_needed = -(-_MIN_TOTAL_STEPS // max(n_outer, 1))
    if steps_needed > 1 and total_units >= steps_needed:
        step_cap = max(total_units // steps_needed, 1)
        tile = max(min(tile, step_cap), min(min_dma, tile))

    # Snap to the layout quantum (sublane pack on the dense 4-D path) so vreg
    # tiles stay dense; the last grid block may still be partial (masked).
    if quantum > 1 and tile > quantum:
        tile = (tile // quantum) * quantum

    return max(min(tile, total_units), 1)


def _run(x, w_b, *, x_block, x_map, w_map, grid):
    return pl.pallas_call(
        _l2norm_kernel,
        out_shape=jax.ShapeDtypeStruct(x.shape, x.dtype),
        grid_spec=pltpu.PrefetchScalarGridSpec(
            num_scalar_prefetch=0,
            grid=grid,
            in_specs=[
                pl.BlockSpec(x_block, x_map),
                pl.BlockSpec(w_b.shape, w_map),
            ],
            out_specs=pl.BlockSpec(x_block, x_map),
        ),
        compiler_params=pltpu.CompilerParams(
            dimension_semantics=("parallel", "parallel"),
            vmem_limit_bytes=_VMEM_LIMIT_BYTES,
        ),
    )(x, w_b)


@jax.jit
def l2norm(x_nchw: jax.Array, weight: jax.Array) -> jax.Array:
    """L2Norm forward. x_nchw: (N, C, H, W), weight: (C,)."""
    n, c, h, w = x_nchw.shape
    hw = h * w
    itemsize = x_nchw.dtype.itemsize
    sub = _sublane_pack(itemsize)

    if hw % _LANE == 0:
        # Dense 4-D layout (free reshape): every (sub,128) vreg tile is fully
        # packed regardless of C; the channel reduction is pure VPU adds.
        rows = hw // _LANE
        x4 = x_nchw.reshape(n, c, rows, _LANE)
        w4 = weight.reshape(1, c, 1, 1)
        tile_rows = _choose_tile_units(rows, c * _LANE * itemsize, n, sub)
        out = _run(
            x4, w4,
            x_block=(1, c, tile_rows, _LANE),
            x_map=lambda i, j: (i, 0, j, 0),
            w_map=lambda i, j: (0, 0, 0, 0),
            grid=(n, pl.cdiv(rows, tile_rows)),
        )
    else:
        # Fallback for HW not a multiple of 128: native (N, C, HW) view, C on
        # the sublane axis, masked partial last tile (no pad/slice HBM passes).
        x3 = x_nchw.reshape(n, c, hw)
        w3 = weight.reshape(1, c, 1)
        c_pad = -(-c // sub) * sub                      # sublane-padded C
        tile_units = _choose_tile_units(
            pl.cdiv(hw, _LANE), c_pad * _LANE * itemsize, n, 1)
        tile_hw = tile_units * _LANE
        out = _run(
            x3, w3,
            x_block=(1, c, tile_hw),
            x_map=lambda i, j: (i, 0, j),
            w_map=lambda i, j: (0, 0, 0),
            grid=(n, pl.cdiv(hw, tile_hw)),
        )

    return out.reshape(n, c, h, w)


def l2norm_reference(x_nchw, weight):
    norm = jnp.sqrt(jnp.sum(x_nchw * x_nchw, axis=1, keepdims=True)) + EPS
    return weight.reshape(1, -1, 1, 1) * (x_nchw / norm)


if __name__ == "__main__":
    key = jax.random.PRNGKey(0)
    n_channels = 4
    scale = 20.0  # SSD uses gamma=20 for L2Norm (init.constant_(weight, gamma))
    weight = jnp.full((n_channels,), scale, dtype=jnp.float32)

    # Main case: H*W multiple of 128 -> dense 4-D path.
    x = jax.random.normal(key, (2, n_channels, 16, 16), dtype=jnp.float32)
    out = jax.block_until_ready(l2norm(x, weight))
    ref = l2norm_reference(x, weight)
    assert out.shape == x.shape and out.dtype == x.dtype
    assert jnp.allclose(out, ref, atol=1e-5, rtol=1e-5), "mismatch vs reference (4-D path)"

    # Awkward spatial size (SSD conv4_3 style) -> 3-D masked-partial-tile path.
    x2 = jax.random.normal(jax.random.PRNGKey(1), (1, n_channels, 19, 19),
                           dtype=jnp.float32)
    out2 = jax.block_until_ready(l2norm(x2, weight))
    ref2 = l2norm_reference(x2, weight)
    assert jnp.allclose(out2, ref2, atol=1e-5, rtol=1e-5), "mismatch vs reference (3-D path)"

    print("KERNEL_OK")
</pallas_src>

<mosaic_0001>
module attributes {stable_mosaic.version = 11 : i64} {
  func.func @_l2norm_kernel(%arg0: i32, %arg1: i32, %arg2: memref<1x4x2x128xf32, #tpu.memory_space<vmem>>, %arg3: memref<1x4x1x1xf32, #tpu.memory_space<vmem>>, %arg4: memref<1x4x2x128xf32, #tpu.memory_space<vmem>>) attributes {dimension_semantics = [#tpu.dimension_semantics<parallel>, #tpu.dimension_semantics<parallel>], iteration_bounds = array<i64: 2, 1>, scalar_prefetch = 0 : i64, scratch_operands = 0 : i64, tpu.core_type = #tpu.core_type<tc>, window_params = [{transform_indices = @transform_0, window_bounds = array<i64: 1, 4, 2, 128>}, {pipeline_mode = #tpu.pipeline_mode<synchronous>, transform_indices = @transform_1, window_bounds = array<i64: 1, 4, 1, 1>}, {transform_indices = @transform_2, window_bounds = array<i64: 1, 4, 2, 128>}]} {
    %c0 = arith.constant 0 : index
    %c0_0 = arith.constant 0 : index
    %c0_1 = arith.constant 0 : index
    %c0_2 = arith.constant 0 : index
    %0 = vector.load %arg2[%c0, %c0_0, %c0_1, %c0_2] : memref<1x4x2x128xf32, #tpu.memory_space<vmem>>, vector<1x4x2x128xf32>
    %1 = arith.mulf %0, %0 : vector<1x4x2x128xf32>
    %cst = arith.constant dense<0.000000e+00> : vector<1x2x128xf32>
    %2 = vector.multi_reduction <add>, %1, %cst [1] : vector<1x4x2x128xf32> to vector<1x2x128xf32>
    %3 = vector.shape_cast %2 : vector<1x2x128xf32> to vector<1x1x2x128xf32>
    %4 = math.sqrt %3 : vector<1x1x2x128xf32>
    %cst_3 = arith.constant 1.000000e-10 : f32
    %5 = vector.broadcast %cst_3 : f32 to vector<1x1x2x128xf32>
    %6 = arith.addf %4, %5 : vector<1x1x2x128xf32>
    %7 = tpu.reciprocal %6 : vector<1x1x2x128xf32> -> vector<1x1x2x128xf32>
    %8 = vector.broadcast %7 : vector<1x1x2x128xf32> to vector<1x4x2x128xf32>
    %9 = arith.mulf %0, %8 : vector<1x4x2x128xf32>
    %c0_4 = arith.constant 0 : index
    %c0_5 = arith.constant 0 : index
    %c0_6 = arith.constant 0 : index
    %c0_7 = arith.constant 0 : index
    %10 = vector.load %arg3[%c0_4, %c0_5, %c0_6, %c0_7] : memref<1x4x1x1xf32, #tpu.memory_space<vmem>>, vector<1x4x1x1xf32>
    %11 = vector.broadcast %10 : vector<1x4x1x1xf32> to vector<1x4x2x128xf32>
    %12 = arith.mulf %9, %11 : vector<1x4x2x128xf32>
    %c0_8 = arith.constant 0 : index
    %c0_9 = arith.constant 0 : index
    %c0_10 = arith.constant 0 : index
    %c0_11 = arith.constant 0 : index
    %13 = vector.load %arg4[%c0_8, %c0_9, %c0_10, %c0_11] : memref<1x4x2x128xf32, #tpu.memory_space<vmem>>, vector<1x4x2x128xf32>
    tpu.vector_store %arg4[%c0_8, %c0_9, %c0_10, %c0_11], %12 {strides = array<i32>} : memref<1x4x2x128xf32, #tpu.memory_space<vmem>>, vector<1x4x2x128xf32>,
    return
  }
  func.func @transform_0(%arg0: i32, %arg1: i32) -> (i32, i32, i32, i32) {
    %c0_i32 = arith.constant 0 : i32
    %c0_i32_0 = arith.constant 0 : i32
    %c0_i32_1 = arith.constant 0 : i32
    return %arg0, %c0_i32, %arg1, %c0_i32_0 : i32, i32, i32, i32
  }
  func.func @transform_1(%arg0: i32, %arg1: i32) -> (i32, i32, i32, i32) {
    %c0_i32 = arith.constant 0 : i32
    %c0_i32_0 = arith.constant 0 : i32
    %c0_i32_1 = arith.constant 0 : i32
    %c0_i32_2 = arith.constant 0 : i32
    %c0_i32_3 = arith.constant 0 : i32
    return %c0_i32, %c0_i32_0, %c0_i32_1, %c0_i32_2 : i32, i32, i32, i32
  }
  func.func @transform_2(%arg0: i32, %arg1: i32) -> (i32, i32, i32, i32) {
    %c0_i32 = arith.constant 0 : i32
    %c0_i32_0 = arith.constant 0 : i32
    %c0_i32_1 = arith.constant 0 : i32
    return %arg0, %c0_i32, %arg1, %c0_i32_0 : i32, i32, i32, i32
  }
}

</mosaic_0001>

<llo_original>
// kernel: l2norm.1
$region0: #{l2norm.1}
  #allocation0 [shape = 'u32[]', space=smem, size = 0x4, offset = 0x4, fixed_abs, tag = 'smem constant byte address 0x4 - core index']
  #allocation1 [shape = 'u32[144,128]{1,0:T(1,128)}', space=vmem, size = 0x12000, scoped, tag = 'internal scratch']
  %s0 = inlined_call_operand.vmem [shape: f32[2,4,2,128], index: 0, kind: input, shape index: {}]
  %s1 = inlined_call_operand.vmem [shape: f32[1,4,1,1], index: 1, kind: input, shape index: {}]
  %s2 = inlined_call_operand.vmem [shape: f32[2,4,2,128], index: 2, kind: output, shape index: {}]
  %s3 = sld [smem:[#allocation0]]
  $region41: #{l2norm.1} parent=0
    _
  %s5 = ssub.s32 1, %s3
  %s6 = scalar_select 0, %s5, %s3
  loop: start=0, step=1, limit=4
  $region2: #{l2norm.1} parent=0 // loop_pre_header
    _
  $region3: #{l2norm.1} parent=0 // loop_header
    %s8 = sphi 0, %s12
    %p9 = scmp.ge.s32.totalorder %s8, 4
    %s15 = sphi 0, %s27
    %s16 = sphi 0, %s23
    %s17 = sphi 0, %s15
    %s18 = sphi 0, %s16
    %s19 = sphi 0, %s17
    %s20 = sphi 0, %s18
    %s32 = sphi 0, %s34
    %s35 = sphi 0, %s32
    %s36 = sphi 0, %s35
    %s52 = sphi 0, %s36
    %s56 = sphi 0, %s56
    %s58 = sphi 0, %s56
    %s59 = sphi 0, %s58
    %s73 = sphi 0, %s59
    %s81 = sphi 0, %s83
    %s84 = sphi 0, %s81
    %s85 = sphi 0, %s84
    %s101 = sphi 0, %s85
  $region4: #{l2norm.1} parent=0 // loop_header_branch
    %11 = sbr.rel (%p9) target = $region8
  $region5: #{l2norm.1} parent=0 // loop_body
    %s13 = ssub.s32 %s8, 1
    %s14 = ssub.s32 %s8, 2
    %s21 = sadd.s32 1, %s16
    %p22 = scmp.ge.s32.totalorder %s21, 1
    %s23 = scalar_select %p22, 0, %s21
    %s24 = sadd.s32 1, %s15
    %s25 = scalar_select %p22, %s24, %s15
    %p26 = scmp.ge.s32.totalorder %s25, 2
    %s27 = scalar_select %p26, 0, %s25
    %s28 = ssub.s32 %s15, %s27
    %s29 = ssub.s32 %s16, %s23
    %s30 = sor.u32 %s28, %s29
    %p31 = scmp.eq.s32.totalorder %s30, 0
    %s33 = sadd.s32 %s32, 1
    %s34 = scalar_select %p31, %s32, %s33
    %p37 = pneg %p31
    %p38 = scmp.eq.s32.totalorder %s8, 1
    %p39 = por %p37, %p38
    %p40 = scmp.ne.s32.totalorder %s32, %s35
    %p41 = scmp.eq.s32.totalorder %s8, 0
    %p42 = por %p40, %p41
    %p43 = scmp.ne.s32.totalorder %s32, %s35
    %p44 = scmp.eq.s32.totalorder %s13, 1
    %p45 = por %p43, %p44
    %p46 = scmp.ne.s32.totalorder %s35, %s36
    %p47 = scmp.eq.s32.totalorder %s13, 0
    %p48 = por %p46, %p47
    %p49 = scmp.ne.s32.totalorder %s35, %s36
    %p50 = scmp.eq.s32.totalorder %s14, 1
    %p51 = por %p49, %p50
    %p53 = scmp.ne.s32.totalorder %s36, %s52
    %p54 = scmp.eq.s32.totalorder %s14, 0
    %p55 = por %p53, %p54
    %s57 = sadd.s32 %s56, 1
    %p60 = scmp.eq.s32.totalorder %s8, 1
    %p61 = scmp.ne.s32.totalorder %s56, %s58
    %p62 = scmp.eq.s32.totalorder %s8, 0
    %p63 = por %p61, %p62
    %p64 = scmp.ne.s32.totalorder %s56, %s58
    %p65 = scmp.eq.s32.totalorder %s13, 1
    %p66 = por %p64, %p65
    %p67 = scmp.ne.s32.totalorder %s58, %s59
    %p68 = scmp.eq.s32.totalorder %s13, 0
    %p69 = por %p67, %p68
    %p70 = scmp.ne.s32.totalorder %s58, %s59
    %p71 = scmp.eq.s32.totalorder %s14, 1
    %p72 = por %p70, %p71
    %p74 = scmp.ne.s32.totalorder %s59, %s73
    %p75 = scmp.eq.s32.totalorder %s14, 0
    %p76 = por %p74, %p75
    %s77 = ssub.s32 %s15, %s27
    %s78 = ssub.s32 %s16, %s23
    %s79 = sor.u32 %s77, %s78
    %p80 = scmp.eq.s32.totalorder %s79, 0
    %s82 = sadd.s32 %s81, 1
    %s83 = scalar_select %p80, %s81, %s82
    %p86 = pneg %p80
    %p87 = scmp.eq.s32.totalorder %s8, 1
    %p88 = por %p86, %p87
    %p89 = scmp.ne.s32.totalorder %s81, %s84
    %p90 = scmp.eq.s32.totalorder %s8, 0
    %p91 = por %p89, %p90
    %p92 = scmp.ne.s32.totalorder %s81, %s84
    %p93 = scmp.eq.s32.totalorder %s13, 1
    %p94 = por %p92, %p93
    %p95 = scmp.ne.s32.totalorder %s84, %s85
    %p96 = scmp.eq.s32.totalorder %s13, 0
    %p97 = por %p95, %p96
    %p98 = scmp.ne.s32.totalorder %s84, %s85
    %p99 = scmp.eq.s32.totalorder %s14, 1
    %p100 = por %p98, %p99
    %p102 = scmp.ne.s32.totalorder %s85, %s101
    %p103 = scmp.eq.s32.totalorder %s14, 0
    %p104 = por %p102, %p103
    %p105 = scmp.le.s32.totalorder 1, %s8
    %p106 = scmp.lt.s32.totalorder %s8, 3
    %p107 = pnand %p105, %p106
    %p108 = pneg %p107
    // Predicated region
    $region9: #{l2norm.1} parent=5 // pred_check
      _
    $region10: #{l2norm.1} parent=5 // pred_check_branch
      %110 = sbr.rel (%p107) target = $region12
    $region11: #{l2norm.1} parent=5 // pred_region
      %s111 = ssub.s32 %s8, 1
      // Predicated region
      $region13: #{l2norm.1} parent=11 // pred_check
        %p112 = pneg %p69
      $region14: #{l2norm.1} parent=11 // pred_check_branch
        %114 = sbr.rel (%p112) target = $region16
      $region15: #{l2norm.1} parent=11 // pred_region
        _
      $region16: #{l2norm.1} parent=11 // pred_fallthru
        _
    $region12: #{l2norm.1} parent=5 // pred_fallthru
      _
    %p115 = scmp.lt.s32.totalorder %s8, 2
    // Predicated region
    $region17: #{l2norm.1} parent=5 // pred_check
      %p116 = pneg %p115
    $region18: #{l2norm.1} parent=5 // pred_check_branch
      %118 = sbr.rel (%p116) target = $region20
    $region19: #{l2norm.1} parent=5 // pred_region
      // Predicated region
      $region21: #{l2norm.1} parent=19 // pred_check
        %p119 = pneg %p42
      $region22: #{l2norm.1} parent=19 // pred_check_branch
        %121 = sbr.rel (%p119) target = $region24
      $region23: #{l2norm.1} parent=19 // pred_region
        %p122 = scmp.lt.s32.totalorder %s15, 1
        %s123 = scalar_select %p122, %s15, 1
        %p124 = scmp.lt.s32.totalorder %s16, 0
        %s125 = scalar_select %p124, %s16, 0
        %s126 = smul.addr %s123, 4
        %s127 = sadd.s32 %s125, %s126
        %s128 = smul.addr %s127, 2
        %s129 = scalar_lea.vmem %s0, %s128
      $region24: #{l2norm.1} parent=19 // pred_fallthru
        _
    $region20: #{l2norm.1} parent=5 // pred_fallthru
      _
    %p130 = scmp.le.s32.totalorder 1, %s8
    %p131 = scmp.lt.s32.totalorder %s8, 3
    %p132 = pnand %p130, %p131
    %p133 = pneg %p132
    // Predicated region
    $region25: #{l2norm.1} parent=5 // pred_check
      _
    $region26: #{l2norm.1} parent=5 // pred_check_branch
      %135 = sbr.rel (%p132) target = $region28
    $region27: #{l2norm.1} parent=5 // pred_region
      %s136 = ssub.s32 %s8, 1
      %p137 = scmp.lt.s32.totalorder %s17, 1
      %s138 = scalar_select %p137, %s17, 1
      %p139 = scmp.lt.s32.totalorder %s18, 0
      %s140 = scalar_select %p139, %s18, 0
      %s141 = smul.addr %s138, 4
      %s142 = sadd.s32 %s140, %s141
      %s143 = smul.addr %s142, 2
      %s144 = scalar_lea.vmem %s0, %s143
      %p145 = pneg %p48
      %p146 = pneg %p45
      %p147 = pneg %p69
      %p148 = pneg %p66
      %p149 = pneg %p97
      %p150 = pneg %p94
      %p151 = scmp.lt.s32.totalorder %s17, 1
      %s152 = scalar_select %p151, %s17, 1
      %p153 = scmp.lt.s32.totalorder %s18, 0
      %s154 = scalar_select %p153, %s18, 0
      %s155 = smul.addr %s152, 4
      %s156 = sadd.s32 %s154, %s155
      %s157 = smul.addr %s156, 2
      %s158 = scalar_lea.vmem %s2, %s157
      %p159 = scmp.lt.s32.totalorder %s17, 1
      %s160 = scalar_select %p159, %s17, 1
      %p161 = scmp.lt.s32.totalorder %s18, 0
      %s162 = scalar_select %p161, %s18, 0
      %s163 = smul.addr %s160, 4
      %s164 = sadd.s32 %s162, %s163
      %s165 = smul.addr %s164, 2
      %s166 = scalar_lea.vmem %s0, %s165
      %p167 = scmp.lt.s32.totalorder %s17, 1
      %s168 = scalar_select %p167, %s17, 1
      %p169 = scmp.lt.s32.totalorder %s18, 0
      %s170 = scalar_select %p169, %s18, 0
      %s171 = smul.addr %s168, 4
      %s172 = sadd.s32 %s170, %s171
      %s173 = smul.addr %s172, 2
      %s174 = scalar_lea.vmem %s2, %s173
      %v175 = vld [vmem:[%s166] sm:$0x3]
      %v176 = vld [vmem:[%s166 + $0x2] sm:$0x3]
      %v177 = vld [vmem:[%s166 + $0x4] sm:$0x3]
      %v178 = vld [vmem:[%s166 + $0x6] sm:$0x3]
      %v179 = vmul.f32 %v175, %v175
      %v180 = vmul.f32 %v176, %v176
      %v181 = vmul.f32 %v177, %v177
      %v182 = vmul.f32 %v178, %v178
      %vm183 = vcmask 1041408
      %v184 = vsel %vm183, %v179, 0.0
      %v185 = vsel %vm183, %v180, 0.0
      %v186 = vadd.f32 %v184, %v185
      %v187 = vsel %vm183, %v181, 0.0
      %v188 = vadd.f32 %v186, %v187
      %v189 = vsel %vm183, %v182, 0.0
      %v190 = vadd.f32 %v188, %v189
      %v191 = vrsqrt.pop %v190
      %v192 = vmul.f32 %v190, %v191
      %vm193 = vcmp.eq.f32.partialorder %v190, inf
      %v194 = vsel %vm193, %v190, %v192
      %vm195 = vcmp.eq.f32.partialorder %v190, 0.0
      %v196 = vand.u32 %v190, 2147483648
      %v197 = vsel %vm195, %v196, %v194
      %v198 = vadd.f32 %v197, 1e-10
      %v199 = vrcp.pop %v198
      %v200 = vmul.f32 %v175, %v199
      %v201 = vmul.f32 %v176, %v199
      %v202 = vmul.f32 %v177, %v199
      %v203 = vmul.f32 %v178, %v199
      %v204 = vld [vmem:[%s1] sm:$0x1]
      %v205 = vld [vmem:[%s1 + $0x1] sm:$0x1]
      %v206 = vld [vmem:[%s1 + $0x2] sm:$0x1]
      %v207 = vld [vmem:[%s1 + $0x3] sm:$0x1]
      %v212 = vlaneseq
      %v213 = vshrl.u32 %v212, 7
      %v214 = vsub.s32 0, %v213
      %v215 = vrot.slane %v204, %v214
      %v216 = vlaneseq
      %v217 = vshrl.u32 %v216, 7
      %v218 = vsub.s32 0, %v217
      %v219 = vrot.slane %v205, %v218
      %v220 = vlaneseq
      %v221 = vshrl.u32 %v220, 7
      %v222 = vsub.s32 0, %v221
      %v223 = vrot.slane %v206, %v222
      %v224 = vlaneseq
      %v225 = vshrl.u32 %v224, 7
      %v226 = vsub.s32 0, %v225
      %v227 = vrot.slane %v207, %v226
      %228 = vset.pattern.permute.xlu0 0
      %229 = vperm.xlu0 %228, %v215
      %v230 = vpop.permute.xlu0 %229
      %232 = vset.pattern.permute.xlu0 0
      %233 = vperm.xlu0 %232, %v219
      %v234 = vpop.permute.xlu0 %233
      %236 = vset.pattern.permute.xlu0 0
      %237 = vperm.xlu0 %236, %v223
      %v238 = vpop.permute.xlu0 %237
      %240 = vset.pattern.permute.xlu0 0
      %241 = vperm.xlu0 %240, %v227
      %v242 = vpop.permute.xlu0 %241
      %v244 = vmul.f32 %v200, %v230
      %v245 = vmul.f32 %v201, %v234
      %v246 = vmul.f32 %v202, %v238
      %v247 = vmul.f32 %v203, %v242
      %248 = vst [vmem:[%s174] sm:$0x3] %v244
      %249 = vst [vmem:[%s174 + $0x2] sm:$0x3] %v245
      %250 = vst [vmem:[%s174 + $0x4] sm:$0x3] %v246
      %251 = vst [vmem:[%s174 + $0x6] sm:$0x3] %v247
      %p252 = scmp.lt.s32.totalorder %s17, 1
      %s253 = scalar_select %p252, %s17, 1
      %p254 = scmp.lt.s32.totalorder %s18, 0
      %s255 = scalar_select %p254, %s18, 0
      %s256 = smul.addr %s253, 4
      %s257 = sadd.s32 %s255, %s256
      %s258 = smul.addr %s257, 2
      %s259 = scalar_lea.vmem %s2, %s258
      // Predicated region
      $region29: #{l2norm.1} parent=27 // pred_check
        %p260 = pneg %p94
      $region30: #{l2norm.1} parent=27 // pred_check_branch
        %262 = sbr.rel (%p260) target = $region32
      $region31: #{l2norm.1} parent=27 // pred_region
        _
      $region32: #{l2norm.1} parent=27 // pred_fallthru
        _
    $region28: #{l2norm.1} parent=5 // pred_fallthru
      _
    %p263 = scmp.le.s32.totalorder 2, %s8
    // Predicated region
    $region33: #{l2norm.1} parent=5 // pred_check
      %p264 = pneg %p263
    $region34: #{l2norm.1} parent=5 // pred_check_branch
      %266 = sbr.rel (%p264) target = $region36
    $region35: #{l2norm.1} parent=5 // pred_region
      %s267 = ssub.s32 %s8, 2
      // Predicated region
      $region37: #{l2norm.1} parent=35 // pred_check
        %p268 = pneg %p100
      $region38: #{l2norm.1} parent=35 // pred_check_branch
        %270 = sbr.rel (%p268) target = $region40
      $region39: #{l2norm.1} parent=35 // pred_region
        %p271 = scmp.lt.s32.totalorder %s19, 1
        %s272 = scalar_select %p271, %s19, 1
        %p273 = scmp.lt.s32.totalorder %s20, 0
        %s274 = scalar_select %p273, %s20, 0
        %s275 = smul.addr %s272, 4
        %s276 = sadd.s32 %s274, %s275
        %s277 = smul.addr %s276, 2
        %s278 = scalar_lea.vmem %s2, %s277
      $region40: #{l2norm.1} parent=35 // pred_fallthru
        _
    $region36: #{l2norm.1} parent=5 // pred_fallthru
      _
  $region6: #{l2norm.1} parent=0 // loop_footer
    %s12 = sadd.s32 1, %s8
  $region7: #{l2norm.1} parent=0 // loop_footer_branch
    %7 = sbr.rel target = $region3
  $region8: #{l2norm.1} parent=0 // loop_exit
    _

</llo_original>
